<compile_context>
chip_gen: v5e
topology: v5e:2x2
jax: 0.10.0
libtpu: 0.0.40
codegen_flags: <defaults>
</compile_context>

<pallas_src>
import functools

import jax
import jax.numpy as jnp
from jax.experimental import pallas as pl
from jax.experimental.pallas import tpu as pltpu

LN_EPS = 1e-5  # PyTorch nn.LayerNorm default


def _round_up(a, b):
    return (a + b - 1) // b * b


def _vmem_budget_bytes():
    """~78% of physical VMEM for this chip generation, with a safe fallback."""
    try:
        info = pltpu.get_tpu_info()
        cap = getattr(info, "vmem_capacity_bytes", None)
        if cap:
            return int(cap * 0.78)
    except Exception:
        pass
    # Conservative fallback that is valid even on a v7x core (64 MiB).
    return 48 * 1024 * 1024


def _vmem_estimate(tm, tn, d, mm_bytes):
    """Padding-aware VMEM footprint of the pipelined buffers + scratch."""
    return (2 * tm * d * 4                      # x tiles (double-buffered, f32)
            + 2 * tm * tn * 4                   # out tiles (double-buffered)
            + 2 * d * tn * mm_bytes             # weight tiles (double-buffered)
            + 2 * 8 * _round_up(tn, 128) * 4    # bias tiles, padded to 8 sublanes
            + 2 * 2 * 8 * _round_up(d, 128) * 4 # gamma + beta, padded, 2 buffers
            + max(tm, 16) * d * mm_bytes)       # y scratch (bf16 pads to 16 rows)


def _pick_tiles(rows, d, tm_req, tn_req, mm_bytes, budget):
    """Choose (tm, tn) honoring the requested tiles, shrinking to fit VMEM."""
    rows8 = _round_up(rows, 8)

    # Feature tile: full D for small models, else the requested 128-multiple.
    if d <= tn_req:
        tn = d
    else:
        tn = tn_req
        assert d % tn == 0 and tn % 128 == 0, \
            "d_model must be a multiple of the feature tile (tile of 128)"

    tm = min(_round_up(tm_req, 8), rows8)

    # Megacore (v7x has 2 TensorCores): keep >= 2 row tiles when worthwhile.
    if rows8 // tm < 2 and rows8 >= 256:
        tm = max(128, _round_up(rows8 // 2, 8))

    # Auto-shrink until the padded estimate (with ~15% headroom) fits.
    while _vmem_estimate(tm, tn, d, mm_bytes) * 1.15 > budget and tm > 64:
        tm = max(64, _round_up(tm // 2, 8))
    while (_vmem_estimate(tm, tn, d, mm_bytes) * 1.15 > budget
           and tn > 256 and tn % 256 == 0):
        tn = tn // 2

    vmem_need = int(_vmem_estimate(tm, tn, d, mm_bytes) * 1.15)
    return tm, tn, vmem_need


def _residual_block_kernel(res_ref, x_ref, gamma_ref, beta_ref, w_ref, b_ref,
                           o_ref, y_ref):
    # res_ref: (1,) SMEM        x_ref:  (tm, D)        gamma/beta: (1, D)
    # w_ref:  (D, tn)           b_ref:  (1, tn)        o_ref: (tm, tn)
    # y_ref:  (tm, D) VMEM scratch holding LayerNorm(x) in the matmul dtype.
    j = pl.program_id(1)
    tn = o_ref.shape[-1]
    d = x_ref.shape[-1]

    # ---- LayerNorm over the feature (lane) axis, once per row tile ----
    # Two-pass variance (centered) to avoid E[x^2]-E[x]^2 cancellation; the
    # x tile is resident in VMEM so the second pass is cheap VPU work.
    # Note: padded rows (all zeros) give var=0 -> rsqrt(eps); finite, and the
    # padded rows are sliced off in the wrapper, so this is harmless.
    @pl.when(j == 0)
    def _():
        x = x_ref[...].astype(jnp.float32)
        inv_d = jnp.float32(1.0 / d)
        mean = jnp.sum(x, axis=-1, keepdims=True) * inv_d
        xc = x - mean
        var = jnp.sum(xc * xc, axis=-1, keepdims=True) * inv_d  # biased var
        inv_std = jax.lax.rsqrt(var + LN_EPS)
        y = xc * inv_std * gamma_ref[...] + beta_ref[...]
        y_ref[...] = y.astype(y_ref.dtype)

    # ---- fn = Linear(d_model, d_model): this feature tile on the MXU ----
    h = jnp.dot(y_ref[...], w_ref[...], preferred_element_type=jnp.float32)
    h = h + b_ref[...]

    # ---- ReZero residual: x + resweight * dropout(fn(...)) (eval dropout) ----
    if tn == d:                                  # single feature tile
        x_slab = x_ref[...].astype(jnp.float32)
    else:                                        # slice this tile's columns
        col0 = pl.multiple_of(j * tn, tn)
        x_slab = x_ref[:, pl.ds(col0, tn)].astype(jnp.float32)

    out = x_slab + res_ref[0] * h
    o_ref[...] = out.astype(o_ref.dtype)


@functools.partial(jax.jit, static_argnames=("tm", "tn"))
def residual_block(x, gamma, beta, w, b, resweight, *, tm=512, tn=1024):
    """x: [B, S, D] float32.  Returns [B, S, D].

    The matmul dtype is w.dtype — pass the weight already converted to bf16
    (once, at init) for the MXU fast path; a float32 weight gives an exact
    float32 matmul path.
    """
    B, S, D = x.shape
    rows = B * S

    mm_dtype = w.dtype
    mm_bytes = jnp.dtype(mm_dtype).itemsize

    budget = _vmem_budget_bytes()
    tm_eff, tn_eff, vmem_need = _pick_tiles(rows, D, tm, tn, mm_bytes, budget)
    rows_p = _round_up(rows, tm_eff)

    xf = x.reshape(rows, D)
    if rows_p != rows:
        xf = jnp.pad(xf, ((0, rows_p - rows), (0, 0)))

    grid = (rows_p // tm_eff, D // tn_eff)
    vmem_limit = max(32 * 1024 * 1024, vmem_need)

    cost = pl.CostEstimate(
        flops=2 * rows_p * D * D,
        transcendentals=rows_p,  # one rsqrt per token
        bytes_accessed=2 * rows_p * D * 4 + grid[0] * D * D * mm_bytes,
    )

    out = pl.pallas_call(
        _residual_block_kernel,
        out_shape=jax.ShapeDtypeStruct((rows_p, D), x.dtype),
        grid=grid,
        in_specs=[
            pl.BlockSpec(memory_space=pltpu.SMEM),                   # resweight
            pl.BlockSpec((tm_eff, D), lambda i, j: (i, 0)),          # x rows
            pl.BlockSpec((1, D), lambda i, j: (0, 0)),               # gamma
            pl.BlockSpec((1, D), lambda i, j: (0, 0)),               # beta
            pl.BlockSpec((D, tn_eff), lambda i, j: (0, j)),          # w tile
            pl.BlockSpec((1, tn_eff), lambda i, j: (0, j)),          # b tile
        ],
        out_specs=pl.BlockSpec((tm_eff, tn_eff), lambda i, j: (i, j)),
        scratch_shapes=[pltpu.VMEM((tm_eff, D), mm_dtype)],          # y cache
        compiler_params=pltpu.CompilerParams(
            dimension_semantics=("parallel", "arbitrary"),
            vmem_limit_bytes=int(vmem_limit)),
        cost_estimate=cost,
    )(resweight, xf, gamma.reshape(1, D), beta.reshape(1, D), w,
      b.reshape(1, D))

    return out[:rows].reshape(B, S, D)


def residual_block_ref(x, gamma, beta, w, b, resweight):
    """Pure-JAX reference mirroring the PyTorch forward (eval-mode dropout)."""
    mean = jnp.mean(x, axis=-1, keepdims=True)
    var = jnp.mean((x - mean) ** 2, axis=-1, keepdims=True)
    y = (x - mean) / jnp.sqrt(var + LN_EPS) * gamma + beta
    h = jnp.einsum("bsd,de->bse", y, w) + b
    return x + resweight[0] * h


if __name__ == "__main__":
    key = jax.random.PRNGKey(0)

    # ---- shape 1: small module-scale demo (B=2, S=8, d_model=32) ----
    B, S, D = 2, 8, 32
    k1, k2, k3, key = jax.random.split(key, 4)
    x = jax.random.normal(k1, (B, S, D), jnp.float32)
    gamma = jnp.ones((D,), jnp.float32)                        # LN weight
    beta = jnp.zeros((D,), jnp.float32)                        # LN bias
    w = jax.random.normal(k2, (D, D), jnp.float32) / jnp.sqrt(D)
    b = jax.random.normal(k3, (D,), jnp.float32) * 0.1
    # One-time weight conversion (init-time), not per call inside the jit.
    w_bf16 = jax.device_put(w.astype(jnp.bfloat16))

    # resweight init = 0 (module init) -> identity residual, exact.
    res0 = jnp.zeros((1,), jnp.float32)
    out0 = residual_block(x, gamma, beta, w_bf16, b, res0)
    jax.block_until_ready(out0)
    assert jnp.allclose(out0, residual_block_ref(x, gamma, beta, w, b, res0),
                        atol=1e-6, rtol=1e-6)

    # Non-trivial resweight: exact f32-matmul path (tight tolerance)...
    res1 = jnp.array([0.7], jnp.float32)
    ref1 = residual_block_ref(x, gamma, beta, w, b, res1)
    out_f32 = residual_block(x, gamma, beta, w, b, res1)
    jax.block_until_ready(out_f32)
    assert jnp.allclose(out_f32, ref1, atol=2e-4, rtol=2e-4)

    # ...and the bf16-MXU path (looser tolerance for bf16 rounding).
    out_bf16 = residual_block(x, gamma, beta, w_bf16, b, res1)
    jax.block_until_ready(out_bf16)
    assert jnp.allclose(out_bf16, ref1, atol=5e-2, rtol=5e-2)

    # ---- shape 2: lane-dense d_model, multi-tile 2-D grid + row padding ----
    B2, S2, D2 = 2, 100, 256    # rows=200 -> padded; grid=(4, 2) at tm=64,tn=128
    k1, k2, k3, key = jax.random.split(key, 4)
    x2 = jax.random.normal(k1, (B2, S2, D2), jnp.float32)
    g2 = 1.0 + 0.1 * jax.random.normal(k2, (D2,), jnp.float32)
    be2 = 0.1 * jax.random.normal(k3, (D2,), jnp.float32)
    k1, k2, key = jax.random.split(key, 3)
    w2 = jax.random.normal(k1, (D2, D2), jnp.float32) / jnp.sqrt(D2)
    b2 = jax.random.normal(k2, (D2,), jnp.float32) * 0.1
    w2_bf16 = jax.device_put(w2.astype(jnp.bfloat16))

    ref2 = residual_block_ref(x2, g2, be2, w2, b2, res1)
    # Explicit small tiles: exercises the 2-D grid, column-sliced residual and
    # row padding paths.
    out2_f32 = residual_block(x2, g2, be2, w2, b2, res1, tm=64, tn=128)
    jax.block_until_ready(out2_f32)
    assert jnp.allclose(out2_f32, ref2, atol=2e-4, rtol=2e-4)

    out2_bf16 = residual_block(x2, g2, be2, w2_bf16, b2, res1, tm=64, tn=128)
    jax.block_until_ready(out2_bf16)
    assert jnp.allclose(out2_bf16, ref2, atol=5e-2, rtol=5e-2)

    # Default (large) tiles on the same data: single row tile, full-D feature
    # tile — checks the auto tile selection / VMEM budgeting path.
    out2_def = residual_block(x2, g2, be2, w2_bf16, b2, res1)
    jax.block_until_ready(out2_def)
    assert jnp.allclose(out2_def, ref2, atol=5e-2, rtol=5e-2)

    print("KERNEL_OK")
</pallas_src>

<mosaic_0001>
module attributes {stable_mosaic.version = 11 : i64} {
  func.func @_residual_block_kernel(%arg0: i32, %arg1: i32, %arg2: memref<1xf32, #tpu.memory_space<smem>>, %arg3: memref<16x32xf32, #tpu.memory_space<vmem>>, %arg4: memref<1x32xf32, #tpu.memory_space<vmem>>, %arg5: memref<1x32xf32, #tpu.memory_space<vmem>>, %arg6: memref<32x32xbf16, #tpu.memory_space<vmem>>, %arg7: memref<1x32xf32, #tpu.memory_space<vmem>>, %arg8: memref<16x32xf32, #tpu.memory_space<vmem>>, %arg9: memref<16x32xbf16, #tpu.memory_space<vmem>>) attributes {dimension_semantics = [#tpu.dimension_semantics<parallel>, #tpu.dimension_semantics<arbitrary>], iteration_bounds = array<i64: 1, 1>, scalar_prefetch = 0 : i64, scratch_operands = 1 : i64, tpu.core_type = #tpu.core_type<tc>, window_params = [{transform_indices = @transform_0, window_bounds = array<i64: 1>}, {transform_indices = @transform_1, window_bounds = array<i64: 16, 32>}, {pipeline_mode = #tpu.pipeline_mode<synchronous>, transform_indices = @transform_2, window_bounds = array<i64: 1, 32>}, {pipeline_mode = #tpu.pipeline_mode<synchronous>, transform_indices = @transform_3, window_bounds = array<i64: 1, 32>}, {transform_indices = @transform_4, window_bounds = array<i64: 32, 32>}, {transform_indices = @transform_5, window_bounds = array<i64: 1, 32>}, {transform_indices = @transform_6, window_bounds = array<i64: 16, 32>}]} {
    %c0_i32 = arith.constant 0 : i32
    %0 = arith.cmpi eq, %arg1, %c0_i32 : i32
    %1 = arith.extui %0 : i1 to i32
    %c0_i32_0 = arith.constant 0 : i32
    %2 = arith.cmpi ne, %1, %c0_i32_0 : i32
    scf.if %2 {
      %c0_11 = arith.constant 0 : index
      %c0_12 = arith.constant 0 : index
      %15 = vector.load %arg3[%c0_11, %c0_12] : memref<16x32xf32, #tpu.memory_space<vmem>>, vector<16x32xf32>
      %cst_13 = arith.constant dense<0.000000e+00> : vector<16xf32>
      %16 = vector.multi_reduction <add>, %15, %cst_13 [1] : vector<16x32xf32> to vector<16xf32>
      %17 = vector.shape_cast %16 : vector<16xf32> to vector<16x1xf32>
      %cst_14 = arith.constant 3.125000e-02 : f32
      %18 = vector.broadcast %cst_14 : f32 to vector<16x1xf32>
      %19 = arith.mulf %17, %18 : vector<16x1xf32>
      %20 = vector.broadcast %19 : vector<16x1xf32> to vector<16x32xf32>
      %21 = arith.subf %15, %20 : vector<16x32xf32>
      %22 = arith.mulf %21, %21 : vector<16x32xf32>
      %cst_15 = arith.constant dense<0.000000e+00> : vector<16xf32>
      %23 = vector.multi_reduction <add>, %22, %cst_15 [1] : vector<16x32xf32> to vector<16xf32>
      %24 = vector.shape_cast %23 : vector<16xf32> to vector<16x1xf32>
      %cst_16 = arith.constant 3.125000e-02 : f32
      %25 = vector.broadcast %cst_16 : f32 to vector<16x1xf32>
      %26 = arith.mulf %24, %25 : vector<16x1xf32>
      %cst_17 = arith.constant 9.99999974E-6 : f32
      %27 = vector.broadcast %cst_17 : f32 to vector<16x1xf32>
      %28 = arith.addf %26, %27 : vector<16x1xf32>
      %29 = math.rsqrt %28 : vector<16x1xf32>
      %30 = vector.broadcast %29 : vector<16x1xf32> to vector<16x32xf32>
      %31 = arith.mulf %21, %30 : vector<16x32xf32>
      %c0_18 = arith.constant 0 : index
      %c0_19 = arith.constant 0 : index
      %32 = vector.load %arg4[%c0_18, %c0_19] : memref<1x32xf32, #tpu.memory_space<vmem>>, vector<1x32xf32>
      %33 = vector.broadcast %32 : vector<1x32xf32> to vector<16x32xf32>
      %34 = arith.mulf %31, %33 : vector<16x32xf32>
      %c0_20 = arith.constant 0 : index
      %c0_21 = arith.constant 0 : index
      %35 = vector.load %arg5[%c0_20, %c0_21] : memref<1x32xf32, #tpu.memory_space<vmem>>, vector<1x32xf32>
      %36 = vector.broadcast %35 : vector<1x32xf32> to vector<16x32xf32>
      %37 = arith.addf %34, %36 : vector<16x32xf32>
      %38 = arith.truncf %37 : vector<16x32xf32> to vector<16x32xbf16>
      %c0_22 = arith.constant 0 : index
      %c0_23 = arith.constant 0 : index
      %39 = vector.load %arg9[%c0_22, %c0_23] : memref<16x32xbf16, #tpu.memory_space<vmem>>, vector<16x32xbf16>
      tpu.vector_store %arg9[%c0_22, %c0_23], %38 {strides = array<i32>} : memref<16x32xbf16, #tpu.memory_space<vmem>>, vector<16x32xbf16>,
    } else {
    }
    %c0 = arith.constant 0 : index
    %c0_1 = arith.constant 0 : index
    %3 = vector.load %arg9[%c0, %c0_1] : memref<16x32xbf16, #tpu.memory_space<vmem>>, vector<16x32xbf16>
    %c0_2 = arith.constant 0 : index
    %c0_3 = arith.constant 0 : index
    %4 = vector.load %arg6[%c0_2, %c0_3] : memref<32x32xbf16, #tpu.memory_space<vmem>>, vector<32x32xbf16>
    %cst = arith.constant dense<0.000000e+00> : vector<16x32xf32>
    %5 = tpu.matmul %3, %4, %cst {dimension_numbers = #tpu.dot_dimension_numbers<[1], [0], [0], [1], [0, 0, 1, 1], [], []>} : vector<16x32xbf16>, vector<32x32xbf16>, vector<16x32xf32> -> vector<16x32xf32>
    %c0_4 = arith.constant 0 : index
    %c0_5 = arith.constant 0 : index
    %6 = vector.load %arg7[%c0_4, %c0_5] : memref<1x32xf32, #tpu.memory_space<vmem>>, vector<1x32xf32>
    %7 = vector.broadcast %6 : vector<1x32xf32> to vector<16x32xf32>
    %8 = arith.addf %5, %7 : vector<16x32xf32>
    %c0_6 = arith.constant 0 : index
    %c0_7 = arith.constant 0 : index
    %9 = vector.load %arg3[%c0_6, %c0_7] : memref<16x32xf32, #tpu.memory_space<vmem>>, vector<16x32xf32>
    %c0_8 = arith.constant 0 : index
    %10 = memref.load %arg2[%c0_8] : memref<1xf32, #tpu.memory_space<smem>>
    %11 = vector.broadcast %10 : f32 to vector<16x32xf32>
    %12 = arith.mulf %11, %8 : vector<16x32xf32>
    %13 = arith.addf %9, %12 : vector<16x32xf32>
    %c0_9 = arith.constant 0 : index
    %c0_10 = arith.constant 0 : index
    %14 = vector.load %arg8[%c0_9, %c0_10] : memref<16x32xf32, #tpu.memory_space<vmem>>, vector<16x32xf32>
    tpu.vector_store %arg8[%c0_9, %c0_10], %13 {strides = array<i32>} : memref<16x32xf32, #tpu.memory_space<vmem>>, vector<16x32xf32>,
    return
  }
  func.func @transform_0(%arg0: i32, %arg1: i32) -> i32 {
    %c0_i32 = arith.constant 0 : i32
    %c0_i32_0 = arith.constant 0 : i32
    return %c0_i32 : i32
  }
  func.func @transform_1(%arg0: i32, %arg1: i32) -> (i32, i32) {
    %c0_i32 = arith.constant 0 : i32
    %c0_i32_0 = arith.constant 0 : i32
    return %arg0, %c0_i32 : i32, i32
  }
  func.func @transform_2(%arg0: i32, %arg1: i32) -> (i32, i32) {
    %c0_i32 = arith.constant 0 : i32
    %c0_i32_0 = arith.constant 0 : i32
    %c0_i32_1 = arith.constant 0 : i32
    return %c0_i32, %c0_i32_0 : i32, i32
  }
  func.func @transform_3(%arg0: i32, %arg1: i32) -> (i32, i32) {
    %c0_i32 = arith.constant 0 : i32
    %c0_i32_0 = arith.constant 0 : i32
    %c0_i32_1 = arith.constant 0 : i32
    return %c0_i32, %c0_i32_0 : i32, i32
  }
  func.func @transform_4(%arg0: i32, %arg1: i32) -> (i32, i32) {
    %c0_i32 = arith.constant 0 : i32
    %c0_i32_0 = arith.constant 0 : i32
    return %c0_i32, %arg1 : i32, i32
  }
  func.func @transform_5(%arg0: i32, %arg1: i32) -> (i32, i32) {
    %c0_i32 = arith.constant 0 : i32
    %c0_i32_0 = arith.constant 0 : i32
    return %c0_i32, %arg1 : i32, i32
  }
  func.func @transform_6(%arg0: i32, %arg1: i32) -> (i32, i32) {
    %c0_i32 = arith.constant 0 : i32
    return %arg0, %arg1 : i32, i32
  }
}

</mosaic_0001>

<llo_original>
// kernel: residual_block.1
$region0: #{residual_block.1}
  #allocation0 [shape = 'u32[]', space=smem, size = 0x4, offset = 0x4, fixed_abs, tag = 'smem constant byte address 0x4 - core index']
  #allocation1 [shape = 'u32[72,128]{1,0:T(1,128)}', space=vmem, size = 0x9000, scoped, tag = 'internal scratch']
  #allocation2 [shape = 'bf16[16,32]{1,0:T(8,128)(2,1)}', space=vmem, size = 0x1000, scoped, tag = 'scratch operand']
  #allocation3 [shape = 'f32[1]{0:T(128)S(6)}', space=smem, size = 0x200, scoped, tag = 'scoped memory for residual_block.1']
  %s0 = inlined_call_operand.<no memory space> [shape: f32[1], index: 0, kind: input, shape index: {}]
  %s1 = inlined_call_operand.hbm [shape: f32[16,32], index: 1, kind: input, shape index: {}]
  %s2 = inlined_call_operand.vmem [shape: f32[1,32], index: 2, kind: input, shape index: {}]
  %s3 = inlined_call_operand.vmem [shape: f32[1,32], index: 3, kind: input, shape index: {}]
  %s4 = inlined_call_operand.hbm [shape: bf16[32,32], index: 4, kind: input, shape index: {}]
  %s5 = inlined_call_operand.vmem [shape: f32[1,32], index: 5, kind: input, shape index: {}]
  %s6 = inlined_call_operand.hbm [shape: f32[16,32], index: 6, kind: output, shape index: {}]
  %s7 = sld [smem:[#allocation0]]
  $region46: #{residual_block.1} parent=0
    _
  %s9 = ssub.s32 1, %s7
  %s10 = scalar_select 0, %s9, %s7
  %11 = sst [smem:[#allocation3]] %s0
  $region1: #{residual_block.1} parent=0
    #allocation4 [shape = 'u8[8192]{0}', space=vmem, size = 0x2000, scoped, tag = 'input window, operand 1, single buffered']
    #allocation5 [shape = 's32[1]{0}', space=sflag, size = 0x4, scoped, tag = 'scoped memory for residual_block.1']
    #allocation6 [shape = 's32[1]{0}', space=sflag, size = 0x4, scoped, tag = 'scoped memory for residual_block.1']
    #allocation7 [shape = 'u8[8192]{0}', space=vmem, size = 0x2000, scoped, tag = 'input window, operand 4, single buffered']
    #allocation8 [shape = 's32[1]{0}', space=sflag, size = 0x4, scoped, tag = 'scoped memory for residual_block.1']
    #allocation9 [shape = 'u8[8192]{0}', space=vmem, size = 0x2000, scoped, tag = 'output window, operand 0, single buffered']
    %12 = vsyncpa [#allocation5], 0
    %13 = vsyncpa [#allocation8], 0
    %14 = vsyncpa [#allocation6], 0
    // Predicated region
    $region2: #{residual_block.1} parent=1 // pred_check
      _
    $region3: #{residual_block.1} parent=1 // pred_check_branch
      %16 = sbr.rel (0) target = $region5
    $region4: #{residual_block.1} parent=1 // pred_region
      _
    $region5: #{residual_block.1} parent=1 // pred_fallthru
      _
    // Predicated region
    $region6: #{residual_block.1} parent=1 // pred_check
      _
    $region7: #{residual_block.1} parent=1 // pred_check_branch
      %18 = sbr.rel (0) target = $region9
    $region8: #{residual_block.1} parent=1 // pred_region
      %20 = vsyncadd [#allocation5], 0
      %s21 = sshll.u32 %s1, 4
      %s22 = int_to_ptr.hbm [resolvable:$true] %s21
      %s23 = sshll.u32 [#allocation4], 4
      %s24 = int_to_ptr.vmem [resolvable:$true] %s23
      %29 = dma.hbm_to_vmem [thread:$0]  %s22, 256, %s24, [#allocation5], 128, 128, 8
    $region9: #{residual_block.1} parent=1 // pred_fallthru
      _
    // Predicated region
    $region10: #{residual_block.1} parent=1 // pred_check
      _
    $region11: #{residual_block.1} parent=1 // pred_check_branch
      %31 = sbr.rel (0) target = $region13
    $region12: #{residual_block.1} parent=1 // pred_region
      _
    $region13: #{residual_block.1} parent=1 // pred_fallthru
      _
    // Predicated region
    $region14: #{residual_block.1} parent=1 // pred_check
      _
    $region15: #{residual_block.1} parent=1 // pred_check_branch
      %33 = sbr.rel (0) target = $region17
    $region16: #{residual_block.1} parent=1 // pred_region
      _
    $region17: #{residual_block.1} parent=1 // pred_fallthru
      _
    // Predicated region
    $region18: #{residual_block.1} parent=1 // pred_check
      _
    $region19: #{residual_block.1} parent=1 // pred_check_branch
      %35 = sbr.rel (0) target = $region21
    $region20: #{residual_block.1} parent=1 // pred_region
      %37 = vsyncadd [#allocation8], 0
      %s38 = sshll.u32 %s4, 4
      %s39 = int_to_ptr.hbm [resolvable:$true] %s38
      %s40 = sshll.u32 [#allocation7], 4
      %s41 = int_to_ptr.vmem [resolvable:$true] %s40
      %46 = dma.hbm_to_vmem [thread:$0]  %s39, 256, %s41, [#allocation8], 64, 64, 4
    $region21: #{residual_block.1} parent=1 // pred_fallthru
      _
    // Predicated region
    $region22: #{residual_block.1} parent=1 // pred_check
      _
    $region23: #{residual_block.1} parent=1 // pred_check_branch
      %48 = sbr.rel (0) target = $region25
    $region24: #{residual_block.1} parent=1 // pred_region
      _
    $region25: #{residual_block.1} parent=1 // pred_fallthru
      _
    // Predicated region
    $region26: #{residual_block.1} parent=1 // pred_check
      _
    $region27: #{residual_block.1} parent=1 // pred_check_branch
      %50 = sbr.rel (0) target = $region29
    $region28: #{residual_block.1} parent=1 // pred_region
      %52 = dma.done [#allocation5], 256
    $region29: #{residual_block.1} parent=1 // pred_fallthru
      _
    // Predicated region
    $region30: #{residual_block.1} parent=1 // pred_check
      _
    $region31: #{residual_block.1} parent=1 // pred_check_branch
      %54 = sbr.rel (0) target = $region33
    $region32: #{residual_block.1} parent=1 // pred_region
      %56 = dma.done [#allocation8], 256
    $region33: #{residual_block.1} parent=1 // pred_fallthru
      _
    %p58 = scmp.eq.s32.totalorder 0, 0
    // Predicated region
    $region34: #{residual_block.1} parent=1 // pred_check
      %p59 = pneg %p58
    $region35: #{residual_block.1} parent=1 // pred_check_branch
      %61 = sbr.rel (%p59) target = $region37
    $region36: #{residual_block.1} parent=1 // pred_region
      %v62 = vld [vmem:[#allocation4] sm:$0xff]
      %v63 = vld [vmem:[#allocation4 + $0x8] sm:$0xff]
      %vm64 = vcmask 261120
      %v65 = vsel %vm64, %v62, 0.0
      %66 = vadd.xlane.f32.xlu0 %v65
      %v67 = vpop.xlane.xlu0 %66
      %v68 = vsel %vm64, %v63, 0.0
      %69 = vadd.xlane.f32.xlu0 %v68
      %v70 = vpop.xlane.xlu0 %69
      %v71 = vmul.f32 %v67, 0.03125
      %v72 = vmul.f32 %v70, 0.03125
      %v73 = vsub.f32 %v62, %v71
      %v74 = vsub.f32 %v63, %v72
      %v75 = vmul.f32 %v73, %v73
      %v76 = vmul.f32 %v74, %v74
      %v77 = vsel %vm64, %v75, 0.0
      %78 = vadd.xlane.f32.xlu0 %v77
      %v79 = vpop.xlane.xlu0 %78
      %v80 = vsel %vm64, %v76, 0.0
      %81 = vadd.xlane.f32.xlu0 %v80
      %v82 = vpop.xlane.xlu0 %81
      %v83 = vmul.f32 %v79, 0.03125
      %v84 = vmul.f32 %v82, 0.03125
      %v85 = vadd.f32 %v83, 1e-05
      %v86 = vadd.f32 %v84, 1e-05
      %v87 = vrsqrt.pop %v85
      %v88 = vmul.f32 %v87, %v85
      %v89 = vmul.f32 %v88, %v87
      %v90 = vmul.f32 0.5, %v89
      %v91 = vsub.f32 1.5, %v90
      %v92 = vmul.f32 %v87, %v91
      %vm93 = vweird.f32 %v85
      %vm94 = vweird.f32 %v87
      %vm95 = vmor %vm93, %vm94
      %v96 = vsel %vm95, %v87, %v92
      %v97 = vrsqrt.pop %v86
      %v98 = vmul.f32 %v97, %v86
      %v99 = vmul.f32 %v98, %v97
      %v100 = vmul.f32 0.5, %v99
      %v101 = vsub.f32 1.5, %v100
      %v102 = vmul.f32 %v97, %v101
      %vm103 = vweird.f32 %v86
      %vm104 = vweird.f32 %v97
      %vm105 = vmor %vm103, %vm104
      %v106 = vsel %vm105, %v97, %v102
      %v107 = vmul.f32 %v73, %v96
      %v108 = vmul.f32 %v74, %v106
      %v109 = vld [vmem:[%s2] sm:$0x1]
      %v111 = vperm.slane %v109, 0
      %v113 = vmul.f32 %v107, %v111
      %v114 = vmul.f32 %v108, %v111
      %v115 = vld [vmem:[%s3] sm:$0x1]
      %v117 = vperm.slane %v115, 0
      %v119 = vadd.f32 %v113, %v117
      %v120 = vadd.f32 %v114, %v117
      %v121 = vpack.c.bf16 %v119, %v119
      %v122 = vpack.c.bf16 %v120, %v120
      %vm123 = vcmask 257024
      %124 = vst.msk [vmem:[#allocation2] sm:$0xf] %vm123, %v121
      %125 = vst.msk [vmem:[#allocation2 + $0x4] sm:$0xf] %vm123, %v122
    $region37: #{residual_block.1} parent=1 // pred_fallthru
      _
    %v126 = vld [vmem:[#allocation2] sm:$0xf]
    %v127 = vld [vmem:[#allocation2 + $0x4] sm:$0xf]
    %v128 = vld [vmem:[#allocation7] sm:$0xf]
    %v129 = vld [vmem:[#allocation7 + $0x4] sm:$0xf]
    %v130 = vld [vmem:[#allocation7 + $0x8] sm:$0xf]
    %v131 = vld [vmem:[#allocation7 + $0xc] sm:$0xf]
    %v132 = vld [vmem:[%s5] sm:$0x1]
    %v134 = vperm.slane %v132, 0
    %v138 = vunpack.c.l.b16 %v126
    %v139 = vunpack.c.l.b16 %v127
    %v140 = vpack.c.b16 %v139, %v138
    %v145 = vunpack.c.l.b16 %v128
    %v146 = vunpack.c.l.b16 %v129
    %v147 = vunpack.c.l.b16 %v130
    %v148 = vunpack.c.l.b16 %v131
    %v149 = vpack.c.b16 %v146, %v145
    %v150 = vpack.c.b16 %v148, %v147
    %vm153 = vcmask 261120
    %v155 = vsel %vm153, %v140, 0
    %157 = vmatpush.bf16.msra.mxu0 0
    %158 = vmatpush.bf16.msra.mxu0 0
    %159 = vmatpush.bf16.msra.mxu0 0
    %160 = vmatpush.bf16.msra.mxu0 0
    %161 = vmatpush.bf16.msra.mxu0 0
    %162 = vmatpush.bf16.msra.mxu0 0
    %163 = vmatpush.bf16.msra.mxu0 %v150
    %164 = vmatpush.bf16.msra.mxu0 %v149
    %165 = vmatmul.bf16.gmra.mxu0 %v155
    %v166 = vpop.f32.mrf.mxu0
    %v167 = vadd.f32 %v134, %v166
    %v168 = vpop.f32.mrf.mxu0
    %v169 = vadd.f32 %v134, %v168
    %170 = vdwg.mxu0
    %v171 = vld [vmem:[#allocation4] sm:$0xff]
    %v172 = vld [vmem:[#allocation4 + $0x8] sm:$0xff]
    %s173 = sld [smem:[#allocation3]]
    %v174 = vstv %s173
    %v175 = vmul.f32 %v174, %v167
    %v176 = vmul.f32 %v174, %v169
    %v177 = vadd.f32 %v171, %v175
    %v178 = vadd.f32 %v172, %v176
    %179 = vst.msk [vmem:[#allocation9] sm:$0xff] %vm153, %v177
    %180 = vst.msk [vmem:[#allocation9 + $0x8] sm:$0xff] %vm153, %v178
    // Predicated region
    $region38: #{residual_block.1} parent=1 // pred_check
      _
    $region39: #{residual_block.1} parent=1 // pred_check_branch
      %182 = sbr.rel (0) target = $region41
    $region40: #{residual_block.1} parent=1 // pred_region
      %184 = vsyncadd [#allocation6], 0
      %s185 = sshll.u32 [#allocation9], 4
      %s186 = int_to_ptr.vmem [resolvable:$true] %s185
      %s187 = sshll.u32 %s6, 4
      %s188 = int_to_ptr.hbm [resolvable:$true] %s187
      %193 = dma.vmem_to_hbm [thread:$0]  %s186, 256, %s188, [#allocation6], 128, 128, 8
    $region41: #{residual_block.1} parent=1 // pred_fallthru
      _
    // Predicated region
    $region42: #{residual_block.1} parent=1 // pred_check
      _
    $region43: #{residual_block.1} parent=1 // pred_check_branch
      %195 = sbr.rel (0) target = $region45
    $region44: #{residual_block.1} parent=1 // pred_region
      %197 = dma.done [#allocation6], 256
    $region45: #{residual_block.1} parent=1 // pred_fallthru
      _
    %198 = vsyncpa [#allocation5], 1
    %199 = vsyncpa [#allocation8], 1
    %200 = vsyncpa [#allocation6], 1

</llo_original>
